<compile_context>
chip_gen: v5e
topology: v5e:2x2
jax: 0.10.0
libtpu: 0.0.40
codegen_flags: <defaults>
</compile_context>

<pallas_src>
import jax
import jax.numpy as jnp
from jax import lax
from jax.experimental import pallas as pl
from jax.experimental.pallas import tpu as pltpu

LANES = 128
SUB = 16      # sublane multiple safe for both f32 (8) and bf16 (16) block tiling
CHUNK = 512   # rows per in-kernel chunk (bounds elementwise temporary live ranges)


def _cdiv(a, b):
    return -(-a // b)


def _round_up(a, b):
    return _cdiv(a, b) * b


def _num_tensorcores():
    """Best-effort trace-time TensorCore count (2 on v7x, 1 on v5e/v6e)."""
    try:
        info = pltpu.get_tpu_info()
        for attr in ("num_cores", "core_count", "num_tensorcores", "tensorcore_count"):
            v = getattr(info, attr, None)
            if isinstance(v, int) and v > 0:
                return v
    except Exception:
        pass
    try:
        kind = (getattr(jax.devices()[0], "device_kind", "") or "").lower()
        if "v7" in kind:
            return 2
    except Exception:
        pass
    return 1


def _make_loss_kernel(blocks_per_split, block_rows, chunk_rows, valid_rows):
    n_chunks = block_rows // chunk_rows
    align = chunk_rows & (-chunk_rows)  # largest power-of-two divisor of chunk_rows

    def kernel(o_ref, t_ref, a_ref, acc_ref):
        i = pl.program_id(0)
        j = pl.program_id(1)

        @pl.when(j == 0)
        def _():
            acc_ref[...] = jnp.zeros_like(acc_ref)

        block_row0 = (i * blocks_per_split + j) * block_rows
        row_iota = lax.broadcasted_iota(jnp.int32, (chunk_rows, LANES), 0)

        def chunk_body(c, acc):
            r0 = pl.multiple_of(c * chunk_rows, align)
            o = o_ref[pl.ds(r0, chunk_rows), :].astype(jnp.float32)
            t = t_ref[pl.ds(r0, chunk_rows), :].astype(jnp.float32)
            a = a_ref[pl.ds(r0, chunk_rows), :].astype(jnp.float32)

            # BCE with PyTorch's log clamp at -100 (matches torch.nn.BCELoss).
            # Clamp BEFORE the multiply so (1 - t) == 0 kills the clamped log exactly.
            log_o = jnp.maximum(jnp.log(o), jnp.float32(-100.0))
            log_1mo = jnp.maximum(jnp.log(1.0 - o), jnp.float32(-100.0))
            bce = -(t * log_o + (1.0 - t) * log_1mo)
            d = o - a
            terms = bce + d * d

            # Mask rows past the true row count: the trailing partial block (and any
            # clamped fully-out-of-range step) reads undefined VMEM -> select 0.
            rows_left = valid_rows - (block_row0 + r0)
            terms = jnp.where(row_iota < rows_left, terms, 0.0)

            # Vreg-shaped partial sum: pure VPU adds; cross-lane reduce stays outside.
            return acc + terms.reshape(-1, 8, LANES).sum(axis=0)

        acc = lax.fori_loop(0, n_chunks, chunk_body,
                            jnp.zeros((8, LANES), jnp.float32))
        acc_ref[...] += acc

    return kernel


def custom_loss(outputs, targets, auxiliary_targets, *, block_rows=4096, num_splits=None):
    """bce(outputs, targets) + mse(outputs, auxiliary_targets), both mean-reduced."""
    n_elems = outputs.size
    rows = _cdiv(n_elems, LANES)

    if num_splits is None:
        num_splits = _num_tensorcores()
    num_splits = max(1, int(num_splits))
    if rows < 2 * CHUNK:          # tiny problem: one split, one big block
        num_splits = 1

    rows_per_split = _cdiv(rows, num_splits)
    block_rows = max(SUB, min(block_rows, _round_up(rows_per_split, SUB)))
    if block_rows >= CHUNK:
        block_rows = _round_up(block_rows, CHUNK)
        chunk_rows = CHUNK
    else:
        block_rows = _round_up(block_rows, SUB)
        chunk_rows = block_rows
    blocks_per_split = max(1, _cdiv(rows_per_split, block_rows))
    nblocks = _cdiv(rows, block_rows)       # blocks that actually overlap the array

    pad = rows * LANES - n_elems

    def prep(x):
        x = x.reshape(-1)
        if pad:
            # Only when n % 128 != 0: pad (<=127 elems) with 1.0, which contributes
            # exactly 0 to both BCE and MSE.  All block-level tails are handled by
            # the in-kernel row mask, so no further padding/copying is done.
            x = jnp.concatenate([x, jnp.ones((pad,), x.dtype)])
        return x.reshape(rows, LANES)

    o2, t2, a2 = prep(outputs), prep(targets), prep(auxiliary_targets)

    def in_map(i, j):
        # Clamp so a fully out-of-range grid step re-reads the last real block;
        # its contribution is masked to zero inside the kernel.
        return (jnp.minimum(i * blocks_per_split + j, nblocks - 1), 0)

    in_spec = pl.BlockSpec((block_rows, LANES), in_map)

    partial = pl.pallas_call(
        _make_loss_kernel(blocks_per_split, block_rows, chunk_rows, rows),
        out_shape=jax.ShapeDtypeStruct((num_splits * 8, LANES), jnp.float32),
        grid=(num_splits, blocks_per_split),
        in_specs=[in_spec, in_spec, in_spec],
        out_specs=pl.BlockSpec((8, LANES), lambda i, j: (i, 0)),
        compiler_params=pltpu.CompilerParams(
            dimension_semantics=("parallel", "arbitrary"),
            vmem_limit_bytes=32 * 1024 * 1024,
        ),
    )(o2, t2, a2)

    # Single tiny cross-lane reduce + mean scale, done outside the hot loop.
    return partial.sum() / jnp.float32(n_elems)


def _reference_loss(outputs, targets, auxiliary_targets):
    o = outputs.astype(jnp.float32)
    t = targets.astype(jnp.float32)
    a = auxiliary_targets.astype(jnp.float32)
    log_o = jnp.maximum(jnp.log(o), -100.0)
    log_1mo = jnp.maximum(jnp.log(1.0 - o), -100.0)
    bce = jnp.mean(-(t * log_o + (1.0 - t) * log_1mo))
    mse = jnp.mean((o - a) ** 2)
    return bce + mse


if __name__ == "__main__":
    key = jax.random.PRNGKey(0)
    keys = jax.random.split(key, 9)

    # Case 1: small NCHW, element count divisible by 128 (zero-copy reshape path).
    shape1 = (2, 4, 16, 16)  # 2048 elements
    o1 = jax.nn.sigmoid(jax.random.normal(keys[0], shape1, dtype=jnp.float32))
    t1 = jax.random.uniform(keys[1], shape1, dtype=jnp.float32)
    a1 = jax.random.uniform(keys[2], shape1, dtype=jnp.float32)
    loss1 = jax.block_until_ready(custom_loss(o1, t1, a1))
    ref1 = jax.block_until_ready(_reference_loss(o1, t1, a1))
    assert jnp.allclose(loss1, ref1, rtol=1e-4, atol=1e-6), (loss1, ref1)

    # Case 2: awkward size -> exercises the <128-elem pad + in-kernel tail mask.
    shape2 = (3, 5, 17, 19)  # 4845 elements (not a multiple of 128)
    o2 = jax.nn.sigmoid(jax.random.normal(keys[3], shape2, dtype=jnp.float32))
    t2 = jax.random.uniform(keys[4], shape2, dtype=jnp.float32)
    a2 = jax.random.uniform(keys[5], shape2, dtype=jnp.float32)
    loss2 = jax.block_until_ready(custom_loss(o2, t2, a2))
    ref2 = jax.block_until_ready(_reference_loss(o2, t2, a2))
    assert jnp.allclose(loss2, ref2, rtol=1e-4, atol=1e-6), (loss2, ref2)

    # Case 3: medium size, divisible by 128 but not by the block size ->
    # exercises the zero-copy partial-block masking path and the chunked inner loop.
    shape3 = (5, 11, 64, 40)  # 140800 elements = 1100 rows of 128
    o3 = jax.nn.sigmoid(jax.random.normal(keys[6], shape3, dtype=jnp.float32))
    t3 = jax.random.uniform(keys[7], shape3, dtype=jnp.float32)
    a3 = jax.random.uniform(keys[8], shape3, dtype=jnp.float32)
    loss3 = jax.block_until_ready(custom_loss(o3, t3, a3))
    ref3 = jax.block_until_ready(_reference_loss(o3, t3, a3))
    assert jnp.allclose(loss3, ref3, rtol=1e-4, atol=1e-6), (loss3, ref3)

    print("KERNEL_OK")
</pallas_src>

<mosaic_0001>
module attributes {stable_mosaic.version = 11 : i64} {
  func.func @kernel(%arg0: i32, %arg1: i32, %arg2: memref<16x128xf32, #tpu.memory_space<vmem>>, %arg3: memref<16x128xf32, #tpu.memory_space<vmem>>, %arg4: memref<16x128xf32, #tpu.memory_space<vmem>>, %arg5: memref<8x128xf32, #tpu.memory_space<vmem>>) attributes {dimension_semantics = [#tpu.dimension_semantics<parallel>, #tpu.dimension_semantics<arbitrary>], iteration_bounds = array<i64: 1, 1>, scalar_prefetch = 0 : i64, scratch_operands = 0 : i64, tpu.core_type = #tpu.core_type<tc>, window_params = [{transform_indices = @transform_0, window_bounds = array<i64: 16, 128>}, {transform_indices = @transform_1, window_bounds = array<i64: 16, 128>}, {transform_indices = @transform_2, window_bounds = array<i64: 16, 128>}, {transform_indices = @transform_3, window_bounds = array<i64: 8, 128>}]} {
    %c0_i32 = arith.constant 0 : i32
    %0 = arith.cmpi eq, %arg1, %c0_i32 : i32
    %1 = arith.extui %0 : i1 to i32
    %c0_i32_0 = arith.constant 0 : i32
    %2 = arith.cmpi ne, %1, %c0_i32_0 : i32
    scf.if %2 {
      %cst_18 = arith.constant 0.000000e+00 : f32
      %46 = vector.broadcast %cst_18 : f32 to vector<8x128xf32>
      %c0_19 = arith.constant 0 : index
      %c0_20 = arith.constant 0 : index
      %47 = vector.load %arg5[%c0_19, %c0_20] : memref<8x128xf32, #tpu.memory_space<vmem>>, vector<8x128xf32>
      tpu.vector_store %arg5[%c0_19, %c0_20], %46 {strides = array<i32>} : memref<8x128xf32, #tpu.memory_space<vmem>>, vector<8x128xf32>,
    } else {
    }
    %c1_i32 = arith.constant 1 : i32
    %3 = arith.muli %arg0, %c1_i32 : i32
    %4 = arith.addi %3, %arg1 : i32
    %c16_i32 = arith.constant 16 : i32
    %5 = arith.muli %4, %c16_i32 : i32
    %6 = tpu.iota {dimensions = array<i32: 0>} : vector<16x128xi32>
    %cst = arith.constant 0.000000e+00 : f32
    %7 = vector.broadcast %cst : f32 to vector<8x128xf32>
    %c0_i32_1 = arith.constant 0 : i32
    %c16_i32_2 = arith.constant 16 : i32
    %8 = arith.muli %c0_i32_1, %c16_i32_2 : i32
    %9 = tpu.assume_multiple %8, 16 : i32
    %10 = arith.index_cast %9 : i32 to index
    %c0 = arith.constant 0 : index
    %11 = vector.load %arg2[%10, %c0] : memref<16x128xf32, #tpu.memory_space<vmem>>, vector<16x128xf32>
    %12 = arith.index_cast %9 : i32 to index
    %c0_3 = arith.constant 0 : index
    %13 = vector.load %arg3[%12, %c0_3] : memref<16x128xf32, #tpu.memory_space<vmem>>, vector<16x128xf32>
    %14 = arith.index_cast %9 : i32 to index
    %c0_4 = arith.constant 0 : index
    %15 = vector.load %arg4[%14, %c0_4] : memref<16x128xf32, #tpu.memory_space<vmem>>, vector<16x128xf32>
    %16 = math.log %11 : vector<16x128xf32>
    %cst_5 = arith.constant -1.000000e+02 : f32
    %17 = vector.broadcast %cst_5 : f32 to vector<16x128xf32>
    %18 = arith.maximumf %16, %17 : vector<16x128xf32>
    %cst_6 = arith.constant 1.000000e+00 : f32
    %19 = vector.broadcast %cst_6 : f32 to vector<16x128xf32>
    %20 = arith.subf %19, %11 : vector<16x128xf32>
    %21 = math.log %20 : vector<16x128xf32>
    %cst_7 = arith.constant -1.000000e+02 : f32
    %22 = vector.broadcast %cst_7 : f32 to vector<16x128xf32>
    %23 = arith.maximumf %21, %22 : vector<16x128xf32>
    %24 = arith.mulf %13, %18 : vector<16x128xf32>
    %cst_8 = arith.constant 1.000000e+00 : f32
    %25 = vector.broadcast %cst_8 : f32 to vector<16x128xf32>
    %26 = arith.subf %25, %13 : vector<16x128xf32>
    %27 = arith.mulf %26, %23 : vector<16x128xf32>
    %28 = arith.addf %24, %27 : vector<16x128xf32>
    %cst_9 = arith.constant 0.000000e+00 : f32
    %29 = vector.broadcast %cst_9 : f32 to vector<16x128xf32>
    %30 = arith.subf %29, %28 : vector<16x128xf32>
    %31 = arith.subf %11, %15 : vector<16x128xf32>
    %32 = arith.mulf %31, %31 : vector<16x128xf32>
    %33 = arith.addf %30, %32 : vector<16x128xf32>
    %34 = arith.addi %5, %9 : i32
    %c16_i32_10 = arith.constant 16 : i32
    %35 = arith.subi %c16_i32_10, %34 : i32
    %36 = vector.broadcast %35 : i32 to vector<16x128xi32>
    %37 = arith.cmpi slt, %6, %36 : vector<16x128xi32>
    %cst_11 = arith.constant 0.000000e+00 : f32
    %38 = vector.broadcast %cst_11 : f32 to vector<16x128xf32>
    %39 = arith.select %37, %33, %38 : vector<16x128xi1>, vector<16x128xf32>
    %40 = vector.shape_cast %39 : vector<16x128xf32> to vector<2x8x128xf32>
    %cst_12 = arith.constant dense<0.000000e+00> : vector<8x128xf32>
    %41 = vector.multi_reduction <add>, %40, %cst_12 [0] : vector<2x8x128xf32> to vector<8x128xf32>
    %42 = arith.addf %7, %41 : vector<8x128xf32>
    %c1_i32_13 = arith.constant 1 : i32
    %c0_14 = arith.constant 0 : index
    %c0_15 = arith.constant 0 : index
    %43 = vector.load %arg5[%c0_14, %c0_15] : memref<8x128xf32, #tpu.memory_space<vmem>>, vector<8x128xf32>
    %44 = arith.addf %43, %42 : vector<8x128xf32>
    %c0_16 = arith.constant 0 : index
    %c0_17 = arith.constant 0 : index
    %45 = vector.load %arg5[%c0_16, %c0_17] : memref<8x128xf32, #tpu.memory_space<vmem>>, vector<8x128xf32>
    tpu.vector_store %arg5[%c0_16, %c0_17], %44 {strides = array<i32>} : memref<8x128xf32, #tpu.memory_space<vmem>>, vector<8x128xf32>,
    return
  }
  func.func @transform_0(%arg0: i32, %arg1: i32) -> (i32, i32) {
    %c1_i32 = arith.constant 1 : i32
    %0 = arith.muli %arg0, %c1_i32 : i32
    %1 = arith.addi %0, %arg1 : i32
    %c0_i32 = arith.constant 0 : i32
    %2 = arith.minsi %1, %c0_i32 : i32
    %c0_i32_0 = arith.constant 0 : i32
    %c0_i32_1 = arith.constant 0 : i32
    return %2, %c0_i32_0 : i32, i32
  }
  func.func @transform_1(%arg0: i32, %arg1: i32) -> (i32, i32) {
    %c1_i32 = arith.constant 1 : i32
    %0 = arith.muli %arg0, %c1_i32 : i32
    %1 = arith.addi %0, %arg1 : i32
    %c0_i32 = arith.constant 0 : i32
    %2 = arith.minsi %1, %c0_i32 : i32
    %c0_i32_0 = arith.constant 0 : i32
    %c0_i32_1 = arith.constant 0 : i32
    return %2, %c0_i32_0 : i32, i32
  }
  func.func @transform_2(%arg0: i32, %arg1: i32) -> (i32, i32) {
    %c1_i32 = arith.constant 1 : i32
    %0 = arith.muli %arg0, %c1_i32 : i32
    %1 = arith.addi %0, %arg1 : i32
    %c0_i32 = arith.constant 0 : i32
    %2 = arith.minsi %1, %c0_i32 : i32
    %c0_i32_0 = arith.constant 0 : i32
    %c0_i32_1 = arith.constant 0 : i32
    return %2, %c0_i32_0 : i32, i32
  }
  func.func @transform_3(%arg0: i32, %arg1: i32) -> (i32, i32) {
    %c0_i32 = arith.constant 0 : i32
    %c0_i32_0 = arith.constant 0 : i32
    return %arg0, %c0_i32 : i32, i32
  }
}

</mosaic_0001>

<llo_original>
// kernel: tpu_custom_call.1
$region0: #{tpu_custom_call.1}
  #allocation0 [shape = 'u32[]', space=smem, size = 0x4, offset = 0x4, fixed_abs, tag = 'smem constant byte address 0x4 - core index']
  #allocation1 [shape = 'u32[72,128]{1,0:T(1,128)}', space=vmem, size = 0x9000, scoped, tag = 'internal scratch']
  %s0 = inlined_call_operand.hbm [shape: f32[16,128], index: 0, kind: input, shape index: {}]
  %s1 = inlined_call_operand.hbm [shape: f32[16,128], index: 1, kind: input, shape index: {}]
  %s2 = inlined_call_operand.hbm [shape: f32[16,128], index: 2, kind: input, shape index: {}]
  %s3 = inlined_call_operand.hbm [shape: f32[8,128], index: 3, kind: output, shape index: {}]
  %s4 = sld [smem:[#allocation0]]
  $region38: #{tpu_custom_call.1} parent=0
    _
  %s6 = ssub.s32 1, %s4
  %s7 = scalar_select 0, %s6, %s4
  $region1: #{tpu_custom_call.1} parent=0
    #allocation2 [shape = 'u8[8192]{0}', space=vmem, size = 0x2000, scoped, tag = 'input window, operand 0, single buffered']
    #allocation3 [shape = 's32[1]{0}', space=sflag, size = 0x4, scoped, tag = 'scoped memory for tpu_custom_call.1']
    #allocation4 [shape = 's32[1]{0}', space=sflag, size = 0x4, scoped, tag = 'scoped memory for tpu_custom_call.1']
    #allocation5 [shape = 'u8[8192]{0}', space=vmem, size = 0x2000, scoped, tag = 'input window, operand 1, single buffered']
    #allocation6 [shape = 's32[1]{0}', space=sflag, size = 0x4, scoped, tag = 'scoped memory for tpu_custom_call.1']
    #allocation7 [shape = 'u8[8192]{0}', space=vmem, size = 0x2000, scoped, tag = 'input window, operand 2, single buffered']
    #allocation8 [shape = 'u8[4096]{0}', space=vmem, size = 0x1000, scoped, tag = 'output window, operand 0, single buffered']
    %8 = vsyncpa [#allocation3], 0
    %9 = vsyncpa [#allocation6], 0
    %10 = vsyncpa [#allocation4], 0
    // Predicated region
    $region2: #{tpu_custom_call.1} parent=1 // pred_check
      _
    $region3: #{tpu_custom_call.1} parent=1 // pred_check_branch
      %12 = sbr.rel (0) target = $region5
    $region4: #{tpu_custom_call.1} parent=1 // pred_region
      %s13 = sadd.s32 0, 0
      %p14 = scmp.lt.s32.totalorder %s13, 0
      %s15 = scalar_select %p14, %s13, 0
      %s16 = smul.u32 2, %s15
      %18 = vsyncadd [#allocation3], 0
      %s19 = smul.addr %s16, 8
      %s20 = scalar_lea.hbm %s0, %s19
      %s21 = sshll.u32 %s20, 4
      %s22 = int_to_ptr.hbm [resolvable:$true] %s21
      %s23 = sshll.u32 [#allocation2], 4
      %s24 = int_to_ptr.vmem [resolvable:$true] %s23
      %29 = dma.hbm_to_vmem [thread:$0]  %s22, 256, %s24, [#allocation3], 128, 128, 8
    $region5: #{tpu_custom_call.1} parent=1 // pred_fallthru
      _
    // Predicated region
    $region6: #{tpu_custom_call.1} parent=1 // pred_check
      _
    $region7: #{tpu_custom_call.1} parent=1 // pred_check_branch
      %31 = sbr.rel (0) target = $region9
    $region8: #{tpu_custom_call.1} parent=1 // pred_region
      %s32 = sadd.s32 0, 0
      %p33 = scmp.lt.s32.totalorder %s32, 0
      %s34 = scalar_select %p33, %s32, 0
      %s35 = smul.u32 2, %s34
      %37 = vsyncadd [#allocation6], 0
      %s38 = smul.addr %s35, 8
      %s39 = scalar_lea.hbm %s1, %s38
      %s40 = sshll.u32 %s39, 4
      %s41 = int_to_ptr.hbm [resolvable:$true] %s40
      %s42 = sshll.u32 [#allocation5], 4
      %s43 = int_to_ptr.vmem [resolvable:$true] %s42
      %48 = dma.hbm_to_vmem [thread:$0]  %s41, 256, %s43, [#allocation6], 128, 128, 8
    $region9: #{tpu_custom_call.1} parent=1 // pred_fallthru
      _
    // Predicated region
    $region10: #{tpu_custom_call.1} parent=1 // pred_check
      _
    $region11: #{tpu_custom_call.1} parent=1 // pred_check_branch
      %50 = sbr.rel (0) target = $region13
    $region12: #{tpu_custom_call.1} parent=1 // pred_region
      %s51 = sadd.s32 0, 0
      %p52 = scmp.lt.s32.totalorder %s51, 0
      %s53 = scalar_select %p52, %s51, 0
      %s54 = smul.u32 2, %s53
      %56 = vsyncadd [#allocation6], 0
      %s57 = smul.addr %s54, 8
      %s58 = scalar_lea.hbm %s2, %s57
      %s59 = sshll.u32 %s58, 4
      %s60 = int_to_ptr.hbm [resolvable:$true] %s59
      %s61 = sshll.u32 [#allocation7], 4
      %s62 = int_to_ptr.vmem [resolvable:$true] %s61
      %67 = dma.hbm_to_vmem [thread:$0]  %s60, 256, %s62, [#allocation6], 128, 128, 8
    $region13: #{tpu_custom_call.1} parent=1 // pred_fallthru
      _
    // Predicated region
    $region14: #{tpu_custom_call.1} parent=1 // pred_check
      _
    $region15: #{tpu_custom_call.1} parent=1 // pred_check_branch
      %69 = sbr.rel (0) target = $region17
    $region16: #{tpu_custom_call.1} parent=1 // pred_region
      %71 = dma.done [#allocation3], 256
    $region17: #{tpu_custom_call.1} parent=1 // pred_fallthru
      _
    // Predicated region
    $region18: #{tpu_custom_call.1} parent=1 // pred_check
      _
    $region19: #{tpu_custom_call.1} parent=1 // pred_check_branch
      %73 = sbr.rel (0) target = $region21
    $region20: #{tpu_custom_call.1} parent=1 // pred_region
      %75 = dma.done [#allocation6], 256
    $region21: #{tpu_custom_call.1} parent=1 // pred_fallthru
      _
    // Predicated region
    $region22: #{tpu_custom_call.1} parent=1 // pred_check
      _
    $region23: #{tpu_custom_call.1} parent=1 // pred_check_branch
      %77 = sbr.rel (0) target = $region25
    $region24: #{tpu_custom_call.1} parent=1 // pred_region
      %79 = dma.done [#allocation6], 256
    $region25: #{tpu_custom_call.1} parent=1 // pred_fallthru
      _
    %s80 = sadd.s32 0, 0
    %p81 = scmp.lt.s32.totalorder %s80, 0
    %s82 = scalar_select %p81, %s80, 0
    %s83 = smul.u32 2, %s82
    %s84 = sadd.s32 0, 0
    %p85 = scmp.lt.s32.totalorder %s84, 0
    %s86 = scalar_select %p85, %s84, 0
    %s87 = smul.u32 2, %s86
    %s88 = sadd.s32 0, 0
    %p89 = scmp.lt.s32.totalorder %s88, 0
    %s90 = scalar_select %p89, %s88, 0
    %s91 = smul.u32 2, %s90
    %p92 = scmp.eq.s32.totalorder 0, 0
    // Predicated region
    $region26: #{tpu_custom_call.1} parent=1 // pred_check
      %p93 = pneg %p92
    $region27: #{tpu_custom_call.1} parent=1 // pred_check_branch
      %95 = sbr.rel (%p93) target = $region29
    $region28: #{tpu_custom_call.1} parent=1 // pred_region
      %96 = vst [vmem:[#allocation8] sm:$0xff] 0.0
    $region29: #{tpu_custom_call.1} parent=1 // pred_fallthru
      _
    %s97 = sadd.s32 0, 0
    %s98 = smul.u32 %s97, 16
    %v99 = vlaneseq
    %v100 = vshrl.u32 %v99, 7
    %v101 = vadd.s32 %v100, 8
    %v102 = vld [vmem:[#allocation2] sm:$0xff]
    %v103 = vld [vmem:[#allocation2 + $0x8] sm:$0xff]
    %v104 = vld [vmem:[#allocation5] sm:$0xff]
    %v105 = vld [vmem:[#allocation5 + $0x8] sm:$0xff]
    %v106 = vld [vmem:[#allocation7] sm:$0xff]
    %v107 = vld [vmem:[#allocation7 + $0x8] sm:$0xff]
    %v108 = vlog2.pop %v102
    %v109 = vmul.f32 %v108, 0.6931472
    %v110 = vlog2.pop %v103
    %v111 = vmul.f32 %v110, 0.6931472
    %v112 = vmax.f32 %v109, -100.0
    %v113 = vmax.f32 %v111, -100.0
    %v114 = vsub.f32 1.0, %v102
    %v115 = vsub.f32 1.0, %v103
    %v116 = vlog2.pop %v114
    %v117 = vmul.f32 %v116, 0.6931472
    %v118 = vlog2.pop %v115
    %v119 = vmul.f32 %v118, 0.6931472
    %v120 = vmax.f32 %v117, -100.0
    %v121 = vmax.f32 %v119, -100.0
    %v122 = vmul.f32 %v104, %v112
    %v123 = vmul.f32 %v105, %v113
    %v124 = vsub.f32 1.0, %v104
    %v125 = vsub.f32 1.0, %v105
    %v126 = vmul.f32 %v124, %v120
    %v127 = vmul.f32 %v125, %v121
    %v128 = vadd.f32 %v122, %v126
    %v129 = vadd.f32 %v123, %v127
    %v130 = vsub.f32 0.0, %v128
    %v131 = vsub.f32 0.0, %v129
    %v132 = vsub.f32 %v102, %v106
    %v133 = vsub.f32 %v103, %v107
    %v134 = vmul.f32 %v132, %v132
    %v135 = vmul.f32 %v133, %v133
    %v136 = vadd.f32 %v130, %v134
    %v137 = vadd.f32 %v131, %v135
    %s138 = sadd.s32 %s98, 0
    %s139 = ssub.s32 16, %s138
    %v140 = vstv %s139
    %vm141 = vcmp.lt.s32.totalorder %v100, %v140
    %vm142 = vcmp.lt.s32.totalorder %v101, %v140
    %v143 = vsel %vm141, %v136, 0.0
    %v144 = vsel %vm142, %v137, 0.0
    %v145 = vadd.f32 %v143, %v144
    %v146 = vadd.f32 %v145, 0.0
    %v147 = vld [vmem:[#allocation8] sm:$0xff]
    %v148 = vadd.f32 %v147, %v146
    %149 = vst [vmem:[#allocation8] sm:$0xff] %v148
    // Predicated region
    $region30: #{tpu_custom_call.1} parent=1 // pred_check
      _
    $region31: #{tpu_custom_call.1} parent=1 // pred_check_branch
      %151 = sbr.rel (0) target = $region33
    $region32: #{tpu_custom_call.1} parent=1 // pred_region
      %153 = vsyncadd [#allocation4], 0
      %s155 = sshll.u32 [#allocation8], 4
      %s156 = int_to_ptr.vmem [resolvable:$true] %s155
      %s157 = sshll.u32 %s3, 4
      %s158 = int_to_ptr.hbm [resolvable:$true] %s157
      %160 = dma.vmem_to_hbm [thread:$0]  %s156, 128, %s158, [#allocation4]
    $region33: #{tpu_custom_call.1} parent=1 // pred_fallthru
      _
    // Predicated region
    $region34: #{tpu_custom_call.1} parent=1 // pred_check
      _
    $region35: #{tpu_custom_call.1} parent=1 // pred_check_branch
      %162 = sbr.rel (0) target = $region37
    $region36: #{tpu_custom_call.1} parent=1 // pred_region
      %164 = dma.done [#allocation4], 128
    $region37: #{tpu_custom_call.1} parent=1 // pred_fallthru
      _
    %165 = vsyncpa [#allocation3], 1
    %166 = vsyncpa [#allocation6], 1
    %167 = vsyncpa [#allocation4], 1

</llo_original>
